<compile_context>
chip_gen: v6e
topology: v6e:2x2x1
jax: 0.10.0
libtpu: 0.0.40
codegen_flags: <defaults>
</compile_context>

<pallas_src>
import jax
import jax.numpy as jnp
from jax.experimental import pallas as pl
from jax.experimental.pallas import tpu as pltpu

LN_EPS = 1e-6  # TRAR's LayerNorm uses eps=1e-6
# TODO(synk): spec does not include the custom LayerNorm class; standard
# nn.LayerNorm semantics (biased variance, eps inside rsqrt) are used here.


def _round_up(x, m):
    return ((x + m - 1) // m) * m


def _vmem_capacity_bytes():
    try:
        return int(pltpu.get_tpu_info().vmem_capacity_bytes)
    except Exception:  # pragma: no cover - fall back to the smallest (v7x) VMEM
        return 64 << 20


def _vmem_need(tm, tn, d_in, x_bytes, w_bytes, w_bufs):
    """Conservative VMEM estimate: pipeline buffers + kernel-body temporaries."""
    # temporaries: x_f32, x_norm, matmul-operand copy (~10 B/elem of the input
    # tile) + the f32 MXU result before the bias add (+ slack).
    temporaries = tm * d_in * 10 + tm * tn * 8
    return (2 * tm * d_in * x_bytes          # double-buffered input tile (native dtype)
            + 2 * tm * tn * 4                # double-buffered output tile (f32)
            + w_bufs * d_in * tn * w_bytes   # folded weight (resident or col-tiled)
            + w_bufs * tn * 4                # folded bias
            + temporaries)


def _pick_tiles(n, d_in, d_out, x_bytes, w_bytes, budget):
    """Pick (tile_rows, tile_cols, weight_resident) under the VMEM budget."""
    # Row tile: big enough to amortize ~0.35us/grid-step overhead, small enough
    # to (a) fit VMEM and (b) leave >= 4 grid steps so v7x's two TCs both work.
    tm = min(2048,
             _round_up(max(n, 1), 8),
             max(8, _round_up(pl.cdiv(max(n, 1), 4), 8)))

    tn = d_out
    w_resident = True
    if d_in * d_out * w_bytes > budget // 2 and d_out % 128 == 0 and d_out > 128:
        # Weight too big to keep fully resident: tile output columns (second
        # "parallel" grid axis) instead of shrinking tm toward 8.
        w_resident = False
        tn = ((budget // 3) // (2 * d_in * w_bytes) // 128) * 128
        tn = min(max(tn, 128), d_out)

    w_bufs = 1 if w_resident else 2
    while tm > 8 and _vmem_need(tm, tn, d_in, x_bytes, w_bytes, w_bufs) > budget:
        tm = max(8, _round_up(tm // 2, 8))
    return tm, tn, w_resident


def _make_kernel(d_in_real, matmul_dtype, out_dtype):
    inv_d = 1.0 / float(d_in_real)

    def kernel(img_ref, w_ref, b_ref, out_ref):
        x = img_ref[...].astype(jnp.float32)                 # (TM, D_in) f32 stats
        mean = jnp.sum(x, axis=-1, keepdims=True) * inv_d
        var = jnp.sum(x * x, axis=-1, keepdims=True) * inv_d - mean * mean
        var = jnp.maximum(var, 0.0)                          # guard cancellation -> NaN
        x_norm = (x - mean) * jax.lax.rsqrt(var + LN_EPS)    # (TM, D_in)
        # gamma/beta are folded into W/b in the wrapper.
        y = jnp.dot(x_norm.astype(matmul_dtype), w_ref[...],
                    preferred_element_type=jnp.float32)      # (TM, TN) f32
        out_ref[...] = (y + b_ref[...].astype(jnp.float32)).astype(out_dtype)

    return kernel


def _pallas_forward(img2d, w_mat, b_mat, *, n, d_in, d_out, tm, tn,
                    w_resident, single_buffer_resident, matmul_dtype,
                    out_dtype, vmem_limit, cost):
    kernel = _make_kernel(d_in, matmul_dtype, out_dtype)
    col_tiled = tn < d_out

    resident_kwargs = {}
    if w_resident and single_buffer_resident:
        # Constant index_map -> never re-fetched; one buffer is enough.
        resident_kwargs = dict(pipeline_mode=pl.Buffered(1))

    if not col_tiled:
        grid = (pl.cdiv(n, tm),)
        in_specs = [
            pl.BlockSpec((tm, d_in), lambda i: (i, 0)),                     # img tile
            pl.BlockSpec((d_in, d_out), lambda i: (0, 0), **resident_kwargs),  # W
            pl.BlockSpec((1, d_out), lambda i: (0, 0), **resident_kwargs),     # b
        ]
        out_specs = pl.BlockSpec((tm, d_out), lambda i: (i, 0))
        dims = ("parallel",)
    else:
        grid = (pl.cdiv(n, tm), pl.cdiv(d_out, tn))
        in_specs = [
            pl.BlockSpec((tm, d_in), lambda i, j: (i, 0)),   # constant over j -> 1 fetch/row-tile
            pl.BlockSpec((d_in, tn), lambda i, j: (0, j)),
            pl.BlockSpec((1, tn), lambda i, j: (0, j)),
        ]
        out_specs = pl.BlockSpec((tm, tn), lambda i, j: (i, j))
        dims = ("parallel", "parallel")

    return pl.pallas_call(
        kernel,
        out_shape=jax.ShapeDtypeStruct((n, d_out), out_dtype),
        grid_spec=pltpu.PrefetchScalarGridSpec(
            num_scalar_prefetch=0,
            grid=grid,
            in_specs=in_specs,
            out_specs=out_specs,
        ),
        compiler_params=pltpu.CompilerParams(
            dimension_semantics=dims,
            vmem_limit_bytes=vmem_limit,
        ),
        cost_estimate=cost,
    )(img2d, w_mat, b_mat)


def cls_layer_video(lang_feat, img_feat, audio_feat, params, *,
                    use_bf16_matmul=True, tile_rows=None):
    """Pallas implementation of cls_layer_video.forward.

    lang_feat / audio_feat are accepted to match the PyTorch signature but are
    unused by the reference forward. img_feat: (..., input_dim), f32 or bf16.
    params: dict with 'ln_gamma' (D_in,), 'ln_beta' (D_in,),
            'w' (D_in, D_out), 'b' (D_out,).
    """
    del lang_feat, audio_feat  # unused by the reference module's forward
    orig_shape = img_feat.shape
    d_in = orig_shape[-1]
    d_out = params["w"].shape[1]

    # ---- wrapper-side precompute (once, outside the kernel) ---------------
    gamma = params["ln_gamma"].astype(jnp.float32)
    beta = params["ln_beta"].astype(jnp.float32)
    w = params["w"].astype(jnp.float32)
    b = params["b"].astype(jnp.float32)
    w_fold = gamma[:, None] * w                 # fold LN scale into the weight
    b_fold = (b + beta @ w).reshape(1, d_out)   # fold LN shift into the bias

    matmul_dtype = jnp.bfloat16 if use_bf16_matmul else jnp.float32
    w_fold = w_fold.astype(matmul_dtype)        # cast once, outside the kernel

    # No padding copy, no dtype upcast: stream the input as-is.
    img2d = img_feat.reshape(-1, d_in)
    n = img2d.shape[0]
    x_bytes = img2d.dtype.itemsize
    w_bytes = jnp.dtype(matmul_dtype).itemsize

    capacity = _vmem_capacity_bytes()
    budget = int(0.70 * capacity)               # generation-aware tile budget

    tm, tn, w_resident = _pick_tiles(n, d_in, d_out, x_bytes, w_bytes, budget)
    if tile_rows is not None:
        tm = max(8, _round_up(tile_rows, 8))

    vmem_need = _vmem_need(tm, tn, d_in, x_bytes, w_bytes, 1 if w_resident else 2)
    vmem_limit = int(min(max(vmem_need + (2 << 20), 32 << 20),
                         int(0.92 * capacity)))

    cost = pl.CostEstimate(
        flops=2 * n * d_in * d_out + 8 * n * d_in,
        transcendentals=n,
        bytes_accessed=(x_bytes * n * d_in
                        + w_bytes * d_in * d_out
                        + 4 * d_out
                        + 4 * n * d_out),
    )

    out_dtype = jnp.float32

    def run(single_buffer_resident):
        return _pallas_forward(
            img2d, w_fold, b_fold,
            n=n, d_in=d_in, d_out=d_out, tm=tm, tn=tn,
            w_resident=w_resident,
            single_buffer_resident=single_buffer_resident,
            matmul_dtype=matmul_dtype, out_dtype=out_dtype,
            vmem_limit=vmem_limit, cost=cost)

    if w_resident:
        try:
            out2d = run(True)      # Buffered(1) on the constant-index W / b blocks
        except Exception:          # pragma: no cover - jax without Buffered(1) support
            out2d = run(False)
    else:
        out2d = run(False)

    return out2d.reshape(*orig_shape[:-1], d_out)


def init_params(key, input_dim, output_dim):
    """Deterministic synthetic parameters matching the module's __init__ shapes."""
    k_w, k_b = jax.random.split(key)
    bound = 1.0 / jnp.sqrt(input_dim)
    return {
        "ln_gamma": jnp.ones((input_dim,), jnp.float32),   # LayerNorm weight init
        "ln_beta": jnp.zeros((input_dim,), jnp.float32),   # LayerNorm bias init
        "w": jax.random.uniform(k_w, (input_dim, output_dim), jnp.float32,
                                minval=-bound, maxval=bound),
        "b": jax.random.uniform(k_b, (output_dim,), jnp.float32,
                                minval=-bound, maxval=bound),
    }


def _reference(img_feat, params):
    x = img_feat
    mean = jnp.mean(x, axis=-1, keepdims=True)
    var = jnp.mean((x - mean) ** 2, axis=-1, keepdims=True)
    xn = (x - mean) / jnp.sqrt(var + LN_EPS)
    y = xn * params["ln_gamma"] + params["ln_beta"]
    return y @ params["w"] + params["b"]


if __name__ == "__main__":
    key = jax.random.PRNGKey(0)
    k_lang, k_img, k_aud, k_param, k_g, k_bt, k_img2 = jax.random.split(key, 7)

    batch, seq, input_dim, output_dim = 2, 8, 32, 16
    lang_feat = jax.random.normal(k_lang, (batch, seq, input_dim), jnp.float32)
    img_feat = jax.random.normal(k_img, (batch, seq, input_dim), jnp.float32)
    audio_feat = jax.random.normal(k_aud, (batch, seq, input_dim), jnp.float32)

    params = init_params(k_param, input_dim, output_dim)
    # Perturb gamma/beta so the affine-fold path is actually exercised.
    params["ln_gamma"] = params["ln_gamma"] + 0.1 * jax.random.normal(
        k_g, (input_dim,), jnp.float32)
    params["ln_beta"] = params["ln_beta"] + 0.1 * jax.random.normal(
        k_bt, (input_dim,), jnp.float32)

    ref = _reference(img_feat, params)

    # Exact path (f32 MXU operands).
    out_f32 = jax.block_until_ready(
        cls_layer_video(lang_feat, img_feat, audio_feat, params,
                        use_bf16_matmul=False))
    assert out_f32.shape == (batch, seq, output_dim)
    assert jnp.allclose(out_f32, ref, atol=1e-4, rtol=1e-4), "f32 path mismatch"

    # Default fast path (bf16 MXU operands, f32 accumulation).
    out_bf16 = jax.block_until_ready(
        cls_layer_video(lang_feat, img_feat, audio_feat, params))
    assert out_bf16.shape == (batch, seq, output_dim)
    assert jnp.allclose(out_bf16, ref, atol=3e-2, rtol=3e-2), "bf16 path mismatch"

    # Native-dtype (bf16) input DMA + ragged final row tile (n not multiple of tm).
    seq_r = 5
    img_r = jax.random.normal(k_img2, (batch, seq_r, input_dim), jnp.float32)
    img_r_bf16 = img_r.astype(jnp.bfloat16)
    ref_r = _reference(img_r_bf16.astype(jnp.float32), params)
    out_r = jax.block_until_ready(
        cls_layer_video(lang_feat[:, :seq_r], img_r_bf16,
                        audio_feat[:, :seq_r], params))
    assert out_r.shape == (batch, seq_r, output_dim)
    assert jnp.allclose(out_r, ref_r, atol=5e-2, rtol=5e-2), \
        "bf16-input / ragged-tile path mismatch"

    print("KERNEL_OK")
</pallas_src>

<mosaic_0001>
module attributes {stable_mosaic.version = 11 : i64} {
  func.func @kernel(%arg0: i32, %arg1: memref<8x32xf32, #tpu.memory_space<vmem>>, %arg2: memref<32x16xf32, #tpu.memory_space<vmem>>, %arg3: memref<1x16xf32, #tpu.memory_space<vmem>>, %arg4: memref<8x16xf32, #tpu.memory_space<vmem>>) attributes {dimension_semantics = [#tpu.dimension_semantics<parallel>], iteration_bounds = array<i64: 2>, scalar_prefetch = 0 : i64, scratch_operands = 0 : i64, tpu.core_type = #tpu.core_type<tc>, window_params = [{transform_indices = @transform_0, window_bounds = array<i64: 8, 32>}, {pipeline_mode = #tpu.pipeline_mode<synchronous>, transform_indices = @transform_1, window_bounds = array<i64: 32, 16>}, {pipeline_mode = #tpu.pipeline_mode<synchronous>, transform_indices = @transform_2, window_bounds = array<i64: 1, 16>}, {transform_indices = @transform_3, window_bounds = array<i64: 8, 16>}]} {
    %c0 = arith.constant 0 : index
    %c0_0 = arith.constant 0 : index
    %0 = vector.load %arg1[%c0, %c0_0] : memref<8x32xf32, #tpu.memory_space<vmem>>, vector<8x32xf32>
    %cst = arith.constant dense<0.000000e+00> : vector<8xf32>
    %1 = vector.multi_reduction <add>, %0, %cst [1] : vector<8x32xf32> to vector<8xf32>
    %2 = vector.shape_cast %1 : vector<8xf32> to vector<8x1xf32>
    %cst_1 = arith.constant 3.125000e-02 : f32
    %3 = vector.broadcast %cst_1 : f32 to vector<8x1xf32>
    %4 = arith.mulf %2, %3 : vector<8x1xf32>
    %5 = arith.mulf %0, %0 : vector<8x32xf32>
    %cst_2 = arith.constant dense<0.000000e+00> : vector<8xf32>
    %6 = vector.multi_reduction <add>, %5, %cst_2 [1] : vector<8x32xf32> to vector<8xf32>
    %7 = vector.shape_cast %6 : vector<8xf32> to vector<8x1xf32>
    %cst_3 = arith.constant 3.125000e-02 : f32
    %8 = vector.broadcast %cst_3 : f32 to vector<8x1xf32>
    %9 = arith.mulf %7, %8 : vector<8x1xf32>
    %10 = arith.mulf %4, %4 : vector<8x1xf32>
    %11 = arith.subf %9, %10 : vector<8x1xf32>
    %cst_4 = arith.constant 0.000000e+00 : f32
    %12 = vector.broadcast %cst_4 : f32 to vector<8x1xf32>
    %13 = arith.maximumf %11, %12 : vector<8x1xf32>
    %14 = vector.broadcast %4 : vector<8x1xf32> to vector<8x32xf32>
    %15 = arith.subf %0, %14 : vector<8x32xf32>
    %cst_5 = arith.constant 9.99999997E-7 : f32
    %16 = vector.broadcast %cst_5 : f32 to vector<8x1xf32>
    %17 = arith.addf %13, %16 : vector<8x1xf32>
    %18 = math.rsqrt %17 : vector<8x1xf32>
    %19 = vector.broadcast %18 : vector<8x1xf32> to vector<8x32xf32>
    %20 = arith.mulf %15, %19 : vector<8x32xf32>
    %c0_6 = arith.constant 0 : index
    %c0_7 = arith.constant 0 : index
    %21 = vector.load %arg2[%c0_6, %c0_7] : memref<32x16xf32, #tpu.memory_space<vmem>>, vector<32x16xf32>
    %cst_8 = arith.constant dense<0.000000e+00> : vector<8x16xf32>
    %22 = tpu.matmul %20, %21, %cst_8 {dimension_numbers = #tpu.dot_dimension_numbers<[1], [0], [0], [1], [0, 0, 1, 1], [], []>} : vector<8x32xf32>, vector<32x16xf32>, vector<8x16xf32> -> vector<8x16xf32>
    %c0_9 = arith.constant 0 : index
    %c0_10 = arith.constant 0 : index
    %23 = vector.load %arg3[%c0_9, %c0_10] : memref<1x16xf32, #tpu.memory_space<vmem>>, vector<1x16xf32>
    %24 = vector.broadcast %23 : vector<1x16xf32> to vector<8x16xf32>
    %25 = arith.addf %22, %24 : vector<8x16xf32>
    %c0_11 = arith.constant 0 : index
    %c0_12 = arith.constant 0 : index
    %26 = vector.load %arg4[%c0_11, %c0_12] : memref<8x16xf32, #tpu.memory_space<vmem>>, vector<8x16xf32>
    tpu.vector_store %arg4[%c0_11, %c0_12], %25 {strides = array<i32>} : memref<8x16xf32, #tpu.memory_space<vmem>>, vector<8x16xf32>,
    return
  }
  func.func @transform_0(%arg0: i32) -> (i32, i32) {
    %c0_i32 = arith.constant 0 : i32
    %c0_i32_0 = arith.constant 0 : i32
    return %arg0, %c0_i32 : i32, i32
  }
  func.func @transform_1(%arg0: i32) -> (i32, i32) {
    %c0_i32 = arith.constant 0 : i32
    %c0_i32_0 = arith.constant 0 : i32
    %c0_i32_1 = arith.constant 0 : i32
    return %c0_i32, %c0_i32_0 : i32, i32
  }
  func.func @transform_2(%arg0: i32) -> (i32, i32) {
    %c0_i32 = arith.constant 0 : i32
    %c0_i32_0 = arith.constant 0 : i32
    %c0_i32_1 = arith.constant 0 : i32
    return %c0_i32, %c0_i32_0 : i32, i32
  }
  func.func @transform_3(%arg0: i32) -> (i32, i32) {
    %c0_i32 = arith.constant 0 : i32
    %c0_i32_0 = arith.constant 0 : i32
    return %arg0, %c0_i32 : i32, i32
  }
}

module attributes {stable_mosaic.version = 11 : i64} {
  func.func @kernel(%arg0: i32, %arg1: memref<8x32xf32, #tpu.memory_space<vmem>>, %arg2: memref<32x16xf32, #tpu.memory_space<vmem>>, %arg3: memref<1x16xf32, #tpu.memory_space<vmem>>, %arg4: memref<8x16xf32, #tpu.memory_space<vmem>>) attributes {dimension_semantics = [#tpu.dimension_semantics<parallel>], iteration_bounds = array<i64: 2>, scalar_prefetch = 0 : i64, scratch_operands = 0 : i64, tpu.core_type = #tpu.core_type<tc>, window_params = [{transform_indices = @transform_0, window_bounds = array<i64: 8, 32>}, {pipeline_mode = #tpu.pipeline_mode<synchronous>, transform_indices = @transform_1, window_bounds = array<i64: 32, 16>}, {pipeline_mode = #tpu.pipeline_mode<synchronous>, transform_indices = @transform_2, window_bounds = array<i64: 1, 16>}, {transform_indices = @transform_3, window_bounds = array<i64: 8, 16>}]} {
    %c0 = arith.constant 0 : index
    %c0_0 = arith.constant 0 : index
    %0 = vector.load %arg1[%c0, %c0_0] : memref<8x32xf32, #tpu.memory_space<vmem>>, vector<8x32xf32>
    %cst = arith.constant dense<0.000000e+00> : vector<8xf32>
    %1 = vector.multi_reduction <add>, %0, %cst [1] : vector<8x32xf32> to vector<8xf32>
    %2 = vector.shape_cast %1 : vector<8xf32> to vector<8x1xf32>
    %cst_1 = arith.constant 3.125000e-02 : f32
    %3 = vector.broadcast %cst_1 : f32 to vector<8x1xf32>
    %4 = arith.mulf %2, %3 : vector<8x1xf32>
    %5 = arith.mulf %0, %0 : vector<8x32xf32>
    %cst_2 = arith.constant dense<0.000000e+00> : vector<8xf32>
    %6 = vector.multi_reduction <add>, %5, %cst_2 [1] : vector<8x32xf32> to vector<8xf32>
    %7 = vector.shape_cast %6 : vector<8xf32> to vector<8x1xf32>
    %cst_3 = arith.constant 3.125000e-02 : f32
    %8 = vector.broadcast %cst_3 : f32 to vector<8x1xf32>
    %9 = arith.mulf %7, %8 : vector<8x1xf32>
    %10 = arith.mulf %4, %4 : vector<8x1xf32>
    %11 = arith.subf %9, %10 : vector<8x1xf32>
    %cst_4 = arith.constant 0.000000e+00 : f32
    %12 = vector.broadcast %cst_4 : f32 to vector<8x1xf32>
    %13 = arith.maximumf %11, %12 : vector<8x1xf32>
    %14 = vector.broadcast %4 : vector<8x1xf32> to vector<8x32xf32>
    %15 = arith.subf %0, %14 : vector<8x32xf32>
    %cst_5 = arith.constant 9.99999997E-7 : f32
    %16 = vector.broadcast %cst_5 : f32 to vector<8x1xf32>
    %17 = arith.addf %13, %16 : vector<8x1xf32>
    %18 = math.rsqrt %17 : vector<8x1xf32>
    %19 = vector.broadcast %18 : vector<8x1xf32> to vector<8x32xf32>
    %20 = arith.mulf %15, %19 : vector<8x32xf32>
    %c0_6 = arith.constant 0 : index
    %c0_7 = arith.constant 0 : index
    %21 = vector.load %arg2[%c0_6, %c0_7] : memref<32x16xf32, #tpu.memory_space<vmem>>, vector<32x16xf32>
    %cst_8 = arith.constant dense<0.000000e+00> : vector<8x16xf32>
    %22 = tpu.matmul %20, %21, %cst_8 {dimension_numbers = #tpu.dot_dimension_numbers<[1], [0], [0], [1], [0, 0, 1, 1], [], []>} : vector<8x32xf32>, vector<32x16xf32>, vector<8x16xf32> -> vector<8x16xf32>
    %c0_9 = arith.constant 0 : index
    %c0_10 = arith.constant 0 : index
    %23 = vector.load %arg3[%c0_9, %c0_10] : memref<1x16xf32, #tpu.memory_space<vmem>>, vector<1x16xf32>
    %24 = vector.broadcast %23 : vector<1x16xf32> to vector<8x16xf32>
    %25 = arith.addf %22, %24 : vector<8x16xf32>
    %c0_11 = arith.constant 0 : index
    %c0_12 = arith.constant 0 : index
    %26 = vector.load %arg4[%c0_11, %c0_12] : memref<8x16xf32, #tpu.memory_space<vmem>>, vector<8x16xf32>
    tpu.vector_store %arg4[%c0_11, %c0_12], %25 {strides = array<i32>} : memref<8x16xf32, #tpu.memory_space<vmem>>, vector<8x16xf32>,
    return
  }
  func.func @transform_0(%arg0: i32) -> (i32, i32) {
    %c0_i32 = arith.constant 0 : i32
    %c0_i32_0 = arith.constant 0 : i32
    return %arg0, %c0_i32 : i32, i32
  }
  func.func @transform_1(%arg0: i32) -> (i32, i32) {
    %c0_i32 = arith.constant 0 : i32
    %c0_i32_0 = arith.constant 0 : i32
    %c0_i32_1 = arith.constant 0 : i32
    return %c0_i32, %c0_i32_0 : i32, i32
  }
  func.func @transform_2(%arg0: i32) -> (i32, i32) {
    %c0_i32 = arith.constant 0 : i32
    %c0_i32_0 = arith.constant 0 : i32
    %c0_i32_1 = arith.constant 0 : i32
    return %c0_i32, %c0_i32_0 : i32, i32
  }
  func.func @transform_3(%arg0: i32) -> (i32, i32) {
    %c0_i32 = arith.constant 0 : i32
    %c0_i32_0 = arith.constant 0 : i32
    return %arg0, %c0_i32 : i32, i32
  }
}

</mosaic_0001>

<llo_original>
// kernel: tpu_custom_call.1
$region0: #{tpu_custom_call.1}
  #allocation0 [shape = 'u32[]', space=smem, size = 0x4, offset = 0x4, fixed_abs, tag = 'smem constant byte address 0x4 - core index']
  #allocation1 [shape = 'u32[144,128]{1,0:T(1,128)}', space=vmem, size = 0x12000, scoped, tag = 'internal scratch']
  %s0 = inlined_call_operand.vmem [shape: f32[16,32], index: 0, kind: input, shape index: {}]
  %s1 = inlined_call_operand.vmem [shape: f32[32,16], index: 1, kind: input, shape index: {}]
  %s2 = inlined_call_operand.vmem [shape: f32[1,16], index: 2, kind: input, shape index: {}]
  %s3 = inlined_call_operand.hbm [shape: f32[16,16], index: 3, kind: output, shape index: {}]
  %s4 = sld [smem:[#allocation0]]
  $region45: #{tpu_custom_call.1} parent=0
    _
  %s6 = ssub.s32 1, %s4
  %s7 = scalar_select 0, %s6, %s4
  $region1: #{tpu_custom_call.1} parent=0
    #allocation2 [shape = 'u8[8192]{0}', space=vmem, size = 0x2000, scoped, tag = 'output window, operand 0']
    #allocation3 [shape = 's32[2]{0}', space=sflag, size = 0x8, scoped, tag = 'scoped memory for tpu_custom_call.1']
    %8 = vsyncpa [#allocation3], 0
    %s9 = scalar_lea.sflag [#allocation3], 1
    %10 = vsyncpa %s9, 0
    loop: start=0, step=1, limit=4
    $region2: #{tpu_custom_call.1} parent=1 // loop_pre_header
      _
    $region3: #{tpu_custom_call.1} parent=1 // loop_header
      %s12 = sphi 0, %s16
      %p13 = scmp.ge.s32.totalorder %s12, 4
      %s22 = sphi 0, %s24
      %s25 = sphi 0, %s22
      %s26 = sphi 0, %s25
      %s42 = sphi 0, %s26
      %s46 = sphi 0, %s46
      %s48 = sphi 0, %s46
      %s49 = sphi 0, %s48
      %s63 = sphi 0, %s49
      %s67 = sphi 0, %s67
      %s69 = sphi 0, %s67
      %s70 = sphi 0, %s69
      %s84 = sphi 0, %s70
      %s90 = sphi 0, %s92
      %s93 = sphi 0, %s90
      %s94 = sphi 0, %s93
      %s110 = sphi 0, %s94
    $region4: #{tpu_custom_call.1} parent=1 // loop_header_branch
      %15 = sbr.rel (%p13) target = $region8
    $region5: #{tpu_custom_call.1} parent=1 // loop_body
      %s17 = ssub.s32 %s12, 1
      %s18 = ssub.s32 %s12, 2
      %s19 = sadd.s32 %s12, 1
      %s20 = ssub.s32 %s12, %s19
      %p21 = scmp.eq.s32.totalorder %s20, 0
      %s23 = sadd.s32 %s22, 1
      %s24 = scalar_select %p21, %s22, %s23
      %p27 = pneg %p21
      %p28 = scmp.eq.s32.totalorder %s12, 1
      %p29 = por %p27, %p28
      %p30 = scmp.ne.s32.totalorder %s22, %s25
      %p31 = scmp.eq.s32.totalorder %s12, 0
      %p32 = por %p30, %p31
      %p33 = scmp.ne.s32.totalorder %s22, %s25
      %p34 = scmp.eq.s32.totalorder %s17, 1
      %p35 = por %p33, %p34
      %p36 = scmp.ne.s32.totalorder %s25, %s26
      %p37 = scmp.eq.s32.totalorder %s17, 0
      %p38 = por %p36, %p37
      %p39 = scmp.ne.s32.totalorder %s25, %s26
      %p40 = scmp.eq.s32.totalorder %s18, 1
      %p41 = por %p39, %p40
      %p43 = scmp.ne.s32.totalorder %s26, %s42
      %p44 = scmp.eq.s32.totalorder %s18, 0
      %p45 = por %p43, %p44
      %s47 = sadd.s32 %s46, 1
      %p50 = scmp.eq.s32.totalorder %s12, 1
      %p51 = scmp.ne.s32.totalorder %s46, %s48
      %p52 = scmp.eq.s32.totalorder %s12, 0
      %p53 = por %p51, %p52
      %p54 = scmp.ne.s32.totalorder %s46, %s48
      %p55 = scmp.eq.s32.totalorder %s17, 1
      %p56 = por %p54, %p55
      %p57 = scmp.ne.s32.totalorder %s48, %s49
      %p58 = scmp.eq.s32.totalorder %s17, 0
      %p59 = por %p57, %p58
      %p60 = scmp.ne.s32.totalorder %s48, %s49
      %p61 = scmp.eq.s32.totalorder %s18, 1
      %p62 = por %p60, %p61
      %p64 = scmp.ne.s32.totalorder %s49, %s63
      %p65 = scmp.eq.s32.totalorder %s18, 0
      %p66 = por %p64, %p65
      %s68 = sadd.s32 %s67, 1
      %p71 = scmp.eq.s32.totalorder %s12, 1
      %p72 = scmp.ne.s32.totalorder %s67, %s69
      %p73 = scmp.eq.s32.totalorder %s12, 0
      %p74 = por %p72, %p73
      %p75 = scmp.ne.s32.totalorder %s67, %s69
      %p76 = scmp.eq.s32.totalorder %s17, 1
      %p77 = por %p75, %p76
      %p78 = scmp.ne.s32.totalorder %s69, %s70
      %p79 = scmp.eq.s32.totalorder %s17, 0
      %p80 = por %p78, %p79
      %p81 = scmp.ne.s32.totalorder %s69, %s70
      %p82 = scmp.eq.s32.totalorder %s18, 1
      %p83 = por %p81, %p82
      %p85 = scmp.ne.s32.totalorder %s70, %s84
      %p86 = scmp.eq.s32.totalorder %s18, 0
      %p87 = por %p85, %p86
      %s88 = ssub.s32 %s12, %s19
      %p89 = scmp.eq.s32.totalorder %s88, 0
      %s91 = sadd.s32 %s90, 1
      %s92 = scalar_select %p89, %s90, %s91
      %p95 = pneg %p89
      %p96 = scmp.eq.s32.totalorder %s12, 1
      %p97 = por %p95, %p96
      %p98 = scmp.ne.s32.totalorder %s90, %s93
      %p99 = scmp.eq.s32.totalorder %s12, 0
      %p100 = por %p98, %p99
      %p101 = scmp.ne.s32.totalorder %s90, %s93
      %p102 = scmp.eq.s32.totalorder %s17, 1
      %p103 = por %p101, %p102
      %p104 = scmp.ne.s32.totalorder %s93, %s94
      %p105 = scmp.eq.s32.totalorder %s17, 0
      %p106 = por %p104, %p105
      %p107 = scmp.ne.s32.totalorder %s93, %s94
      %p108 = scmp.eq.s32.totalorder %s18, 1
      %p109 = por %p107, %p108
      %p111 = scmp.ne.s32.totalorder %s94, %s110
      %p112 = scmp.eq.s32.totalorder %s18, 0
      %p113 = por %p111, %p112
      %p114 = scmp.le.s32.totalorder 1, %s12
      %p115 = scmp.lt.s32.totalorder %s12, 3
      %p116 = pnand %p114, %p115
      %p117 = pneg %p116
      // Predicated region
      $region9: #{tpu_custom_call.1} parent=5 // pred_check
        _
      $region10: #{tpu_custom_call.1} parent=5 // pred_check_branch
        %119 = sbr.rel (%p116) target = $region12
      $region11: #{tpu_custom_call.1} parent=5 // pred_region
        %s120 = ssub.s32 %s12, 1
        // Predicated region
        $region13: #{tpu_custom_call.1} parent=11 // pred_check
          %p121 = pneg %p59
        $region14: #{tpu_custom_call.1} parent=11 // pred_check_branch
          %123 = sbr.rel (%p121) target = $region16
        $region15: #{tpu_custom_call.1} parent=11 // pred_region
          _
        $region16: #{tpu_custom_call.1} parent=11 // pred_fallthru
          _
        // Predicated region
        $region17: #{tpu_custom_call.1} parent=11 // pred_check
          %p124 = pneg %p80
        $region18: #{tpu_custom_call.1} parent=11 // pred_check_branch
          %126 = sbr.rel (%p124) target = $region20
        $region19: #{tpu_custom_call.1} parent=11 // pred_region
          _
        $region20: #{tpu_custom_call.1} parent=11 // pred_fallthru
          _
      $region12: #{tpu_custom_call.1} parent=5 // pred_fallthru
        _
      %p127 = scmp.lt.s32.totalorder %s12, 2
      // Predicated region
      $region21: #{tpu_custom_call.1} parent=5 // pred_check
        %p128 = pneg %p127
      $region22: #{tpu_custom_call.1} parent=5 // pred_check_branch
        %130 = sbr.rel (%p128) target = $region24
      $region23: #{tpu_custom_call.1} parent=5 // pred_region
        // Predicated region
        $region25: #{tpu_custom_call.1} parent=23 // pred_check
          %p131 = pneg %p32
        $region26: #{tpu_custom_call.1} parent=23 // pred_check_branch
          %133 = sbr.rel (%p131) target = $region28
        $region27: #{tpu_custom_call.1} parent=23 // pred_region
          %p134 = scmp.lt.s32.totalorder %s12, 1
          %s135 = scalar_select %p134, %s12, 1
          %s136 = smul.addr %s135, 8
          %s137 = scalar_lea.vmem %s0, %s136
        $region28: #{tpu_custom_call.1} parent=23 // pred_fallthru
          _
      $region24: #{tpu_custom_call.1} parent=5 // pred_fallthru
        _
      %p138 = scmp.le.s32.totalorder 1, %s12
      %p139 = scmp.lt.s32.totalorder %s12, 3
      %p140 = pnand %p138, %p139
      %p141 = pneg %p140
      // Predicated region
      $region29: #{tpu_custom_call.1} parent=5 // pred_check
        _
      $region30: #{tpu_custom_call.1} parent=5 // pred_check_branch
        %143 = sbr.rel (%p140) target = $region32
      $region31: #{tpu_custom_call.1} parent=5 // pred_region
        %s144 = ssub.s32 %s12, 1
        %p145 = scmp.lt.s32.totalorder %s17, 1
        %s146 = scalar_select %p145, %s17, 1
        %s147 = smul.addr %s146, 8
        %s148 = scalar_lea.vmem %s0, %s147
        %p149 = pneg %p38
        %p150 = pneg %p35
        %p151 = pneg %p59
        %p152 = pneg %p56
        %p153 = pneg %p80
        %p154 = pneg %p77
        %p155 = pneg %p106
        %p156 = pneg %p103
        %s157 = sand.u32 %s93, 1
        %s158 = scalar_lea.sflag [#allocation3], %s157
        %s159 = sand.u32 %s93, 1
        %s160 = smul.addr %s159, 8
        %s161 = scalar_lea.vmem [#allocation2], %s160
        %p162 = scmp.lt.s32.totalorder %s17, 1
        %s163 = scalar_select %p162, %s17, 1
        %s164 = smul.addr %s163, 8
        %s165 = scalar_lea.vmem %s0, %s164
        %v166 = vld [vmem:[%s165] sm:$0xff]
        %vm167 = vcmask 261120
        %v168 = vsel %vm167, %v166, 0.0
        %169 = vadd.xlane.f32.xlu0 %v168
        %v170 = vpop.xlane.xlu0 %169
        %v171 = vmul.f32 %v170, 0.03125
        %v172 = vmul.f32 %v166, %v166
        %v173 = vsel %vm167, %v172, 0.0
        %174 = vadd.xlane.f32.xlu0 %v173
        %v175 = vpop.xlane.xlu0 %174
        %v176 = vmul.f32 %v175, 0.03125
        %v177 = vmul.f32 %v171, %v171
        %v178 = vsub.f32 %v176, %v177
        %v179 = vmax.f32 %v178, 0.0
        %v180 = vsub.f32 %v166, %v171
        %v181 = vadd.f32 %v179, 1e-06
        %v182 = vrsqrt.pop %v181
        %v183 = vmul.f32 %v180, %v182
        %v184 = vld [vmem:[%s1] sm:$0xff]
        %v185 = vld [vmem:[%s1 + $0x8] sm:$0xff]
        %v186 = vld [vmem:[%s1 + $0x10] sm:$0xff]
        %v187 = vld [vmem:[%s1 + $0x18] sm:$0xff]
        %v188 = vld [vmem:[%s2] sm:$0x1]
        %v190 = vlaneseq
        %v191 = vshrl.u32 %v190, 7
        %v192 = vsub.s32 0, %v191
        %v193 = vrot.slane %v188, %v192
        %v196 = vsel %vm167, %v183, 0
        %198 = vmatprep.subr.mxu0 0.0
        %199 = vmatpush1.msra.mxu0 0.0
        %200 = vmatprep.subr.mxu0 0.0
        %201 = vmatpush1.msra.mxu0 0.0
        %202 = vmatprep.subr.mxu0 0.0
        %203 = vmatpush1.msra.mxu0 0.0
        %204 = vmatprep.subr.mxu0 0.0
        %205 = vmatpush1.msra.mxu0 0.0
        %206 = vmatprep.subr.mxu0 0.0
        %207 = vmatpush1.msra.mxu0 0.0
        %208 = vmatprep.subr.mxu0 0.0
        %209 = vmatpush1.msra.mxu0 0.0
        %210 = vmatprep.subr.mxu0 0.0
        %211 = vmatpush1.msra.mxu0 0.0
        %212 = vmatprep.subr.mxu0 0.0
        %213 = vmatpush1.msra.mxu0 0.0
        %214 = vmatprep.subr.mxu0 0.0
        %215 = vmatpush1.msra.mxu0 0.0
        %216 = vmatprep.subr.mxu0 0.0
        %217 = vmatpush1.msra.mxu0 0.0
        %218 = vmatprep.subr.mxu0 0.0
        %219 = vmatpush1.msra.mxu0 0.0
        %220 = vmatprep.subr.mxu0 0.0
        %221 = vmatpush1.msra.mxu0 0.0
        %222 = vmatprep.subr.mxu0 0.0
        %223 = vmatpush1.msra.mxu0 %v187
        %224 = vmatprep.subr.mxu0 0.0
        %225 = vmatpush1.msra.mxu0 %v186
        %226 = vmatprep.subr.mxu0 0.0
        %227 = vmatpush1.msra.mxu0 %v185
        %228 = vmatprep.subr.mxu0 0.0
        %229 = vmatpush1.msra.mxu0 %v184
        %230 = vmatprep.subr.mxu0 0.0
        %231 = vmatpush2.msra.mxu0 0.0
        %232 = vmatprep.subr.mxu0 0.0
        %233 = vmatpush2.msra.mxu0 0.0
        %234 = vmatprep.subr.mxu0 0.0
        %235 = vmatpush2.msra.mxu0 0.0
        %236 = vmatprep.subr.mxu0 0.0
        %237 = vmatpush2.msra.mxu0 0.0
        %238 = vmatprep.subr.mxu0 0.0
        %239 = vmatpush2.msra.mxu0 0.0
        %240 = vmatprep.subr.mxu0 0.0
        %241 = vmatpush2.msra.mxu0 0.0
        %242 = vmatprep.subr.mxu0 0.0
        %243 = vmatpush2.msra.mxu0 0.0
        %244 = vmatprep.subr.mxu0 0.0
        %245 = vmatpush2.msra.mxu0 0.0
        %246 = vmatprep.subr.mxu0 0.0
        %247 = vmatpush2.msra.mxu0 0.0
        %248 = vmatprep.subr.mxu0 0.0
        %249 = vmatpush2.msra.mxu0 0.0
        %250 = vmatprep.subr.mxu0 0.0
        %251 = vmatpush2.msra.mxu0 0.0
        %252 = vmatprep.subr.mxu0 0.0
        %253 = vmatpush2.msra.mxu0 0.0
        %254 = vmatprep.subr.mxu0 0.0
        %255 = vmatpush2.msra.mxu0 0.0
        %256 = vmatprep.subr.mxu0 0.0
        %257 = vmatpush2.msra.mxu0 0.0
        %258 = vmatprep.subr.mxu0 0.0
        %259 = vmatpush2.msra.mxu0 0.0
        %260 = vmatprep.subr.mxu0 0.0
        %261 = vmatpush2.msra.mxu0 0.0
        %262 = vmatprep.mubr.f32.mxu0 0.0
        %263 = vmatmul.mubr.f32.gmra.mxu0 %v196
        %v264 = vpop.f32.mrf.mxu0
        %v265 = vadd.f32 %v193, %v264
        %v266 = vpop.f32.mrf.mxu0
        %267 = vdwg.mxu0
        %vm268 = vcmask 130048
        %269 = vst.msk [vmem:[%s161] sm:$0xff] %vm268, %v265
        %s270 = sand.u32 %s93, 1
        %s271 = scalar_lea.sflag [#allocation3], %s270
        %s272 = sand.u32 %s93, 1
        %s273 = smul.addr %s272, 8
        %s274 = scalar_lea.vmem [#allocation2], %s273
        // Predicated region
        $region33: #{tpu_custom_call.1} parent=31 // pred_check
          %p275 = pneg %p103
        $region34: #{tpu_custom_call.1} parent=31 // pred_check_branch
          %277 = sbr.rel (%p275) target = $region36
        $region35: #{tpu_custom_call.1} parent=31 // pred_region
          %s279 = ssub.s32 128, 128
          %280 = vsyncadd %s271, %s279
          %s281 = smul.addr %s17, 128
          %s282 = scalar_lea.hbm %s3, %s281
          %s284 = sshll.u32 %s274, 4
          %s285 = int_to_ptr.vmem [resolvable:$true] %s284
          %287 = dma.vmem_to_hbm [thread:$0]  %s285, 128, %s282, %s271
        $region36: #{tpu_custom_call.1} parent=31 // pred_fallthru
          _
      $region32: #{tpu_custom_call.1} parent=5 // pred_fallthru
        _
      %p288 = scmp.le.s32.totalorder 2, %s12
      // Predicated region
      $region37: #{tpu_custom_call.1} parent=5 // pred_check
        %p289 = pneg %p288
      $region38: #{tpu_custom_call.1} parent=5 // pred_check_branch
        %291 = sbr.rel (%p289) target = $region40
      $region39: #{tpu_custom_call.1} parent=5 // pred_region
        %s292 = ssub.s32 %s12, 2
        // Predicated region
        $region41: #{tpu_custom_call.1} parent=39 // pred_check
          %p293 = pneg %p109
        $region42: #{tpu_custom_call.1} parent=39 // pred_check_branch
          %295 = sbr.rel (%p293) target = $region44
        $region43: #{tpu_custom_call.1} parent=39 // pred_region
          %s296 = sand.u32 %s94, 1
          %s297 = scalar_lea.sflag [#allocation3], %s296
          %s298 = sand.u32 %s94, 1
          %s299 = smul.addr %s298, 8
          %s300 = scalar_lea.vmem [#allocation2], %s299
          %301 = dma.done %s297, 128
        $region44: #{tpu_custom_call.1} parent=39 // pred_fallthru
          _
      $region40: #{tpu_custom_call.1} parent=5 // pred_fallthru
        _
    $region6: #{tpu_custom_call.1} parent=1 // loop_footer
      %s16 = sadd.s32 1, %s12
    $region7: #{tpu_custom_call.1} parent=1 // loop_footer_branch
      %11 = sbr.rel target = $region3
    $region8: #{tpu_custom_call.1} parent=1 // loop_exit
      _
    %302 = vsyncpa [#allocation3], 1
    %s303 = scalar_lea.sflag [#allocation3], 1
    %304 = vsyncpa %s303, 1

// kernel: tpu_custom_call.1
$region0: #{tpu_custom_call.1}
  #allocation0 [shape = 'u32[]', space=smem, size = 0x4, offset = 0x4, fixed_abs, tag = 'smem constant byte address 0x4 - core index']
  #allocation1 [shape = 'u32[144,128]{1,0:T(1,128)}', space=vmem, size = 0x12000, scoped, tag = 'internal scratch']
  %s0 = inlined_call_operand.vmem [shape: f32[16,32], index: 0, kind: input, shape index: {}]
  %s1 = inlined_call_operand.vmem [shape: f32[32,16], index: 1, kind: input, shape index: {}]
  %s2 = inlined_call_operand.vmem [shape: f32[1,16], index: 2, kind: input, shape index: {}]
  %s3 = inlined_call_operand.hbm [shape: f32[16,16], index: 3, kind: output, shape index: {}]
  %s4 = sld [smem:[#allocation0]]
  $region45: #{tpu_custom_call.1} parent=0
    _
  %s6 = ssub.s32 1, %s4
  %s7 = scalar_select 0, %s6, %s4
  $region1: #{tpu_custom_call.1} parent=0
    #allocation2 [shape = 'u8[8192]{0}', space=vmem, size = 0x2000, scoped, tag = 'output window, operand 0']
    #allocation3 [shape = 's32[2]{0}', space=sflag, size = 0x8, scoped, tag = 'scoped memory for tpu_custom_call.1']
    %8 = vsyncpa [#allocation3], 0
    %s9 = scalar_lea.sflag [#allocation3], 1
    %10 = vsyncpa %s9, 0
    loop: start=0, step=1, limit=4
    $region2: #{tpu_custom_call.1} parent=1 // loop_pre_header
      _
    $region3: #{tpu_custom_call.1} parent=1 // loop_header
      %s12 = sphi 0, %s16
      %p13 = scmp.ge.s32.totalorder %s12, 4
      %s22 = sphi 0, %s24
      %s25 = sphi 0, %s22
      %s26 = sphi 0, %s25
      %s42 = sphi 0, %s26
      %s46 = sphi 0, %s46
      %s48 = sphi 0, %s46
      %s49 = sphi 0, %s48
      %s63 = sphi 0, %s49
      %s67 = sphi 0, %s67
      %s69 = sphi 0, %s67
      %s70 = sphi 0, %s69
      %s84 = sphi 0, %s70
      %s90 = sphi 0, %s92
      %s93 = sphi 0, %s90
      %s94 = sphi 0, %s93
      %s110 = sphi 0, %s94
    $region4: #{tpu_custom_call.1} parent=1 // loop_header_branch
      %15 = sbr.rel (%p13) target = $region8
    $region5: #{tpu_custom_call.1} parent=1 // loop_body
      %s17 = ssub.s32 %s12, 1
      %s18 = ssub.s32 %s12, 2
      %s19 = sadd.s32 %s12, 1
      %s20 = ssub.s32 %s12, %s19
      %p21 = scmp.eq.s32.totalorder %s20, 0
      %s23 = sadd.s32 %s22, 1
      %s24 = scalar_select %p21, %s22, %s23
      %p27 = pneg %p21
      %p28 = scmp.eq.s32.totalorder %s12, 1
      %p29 = por %p27, %p28
      %p30 = scmp.ne.s32.totalorder %s22, %s25
      %p31 = scmp.eq.s32.totalorder %s12, 0
      %p32 = por %p30, %p31
      %p33 = scmp.ne.s32.totalorder %s22, %s25
      %p34 = scmp.eq.s32.totalorder %s17, 1
      %p35 = por %p33, %p34
      %p36 = scmp.ne.s32.totalorder %s25, %s26
      %p37 = scmp.eq.s32.totalorder %s17, 0
      %p38 = por %p36, %p37
      %p39 = scmp.ne.s32.totalorder %s25, %s26
      %p40 = scmp.eq.s32.totalorder %s18, 1
      %p41 = por %p39, %p40
      %p43 = scmp.ne.s32.totalorder %s26, %s42
      %p44 = scmp.eq.s32.totalorder %s18, 0
      %p45 = por %p43, %p44
      %s47 = sadd.s32 %s46, 1
      %p50 = scmp.eq.s32.totalorder %s12, 1
      %p51 = scmp.ne.s32.totalorder %s46, %s48
      %p52 = scmp.eq.s32.totalorder %s12, 0
      %p53 = por %p51, %p52
      %p54 = scmp.ne.s32.totalorder %s46, %s48
      %p55 = scmp.eq.s32.totalorder %s17, 1
      %p56 = por %p54, %p55
      %p57 = scmp.ne.s32.totalorder %s48, %s49
      %p58 = scmp.eq.s32.totalorder %s17, 0
      %p59 = por %p57, %p58
      %p60 = scmp.ne.s32.totalorder %s48, %s49
      %p61 = scmp.eq.s32.totalorder %s18, 1
      %p62 = por %p60, %p61
      %p64 = scmp.ne.s32.totalorder %s49, %s63
      %p65 = scmp.eq.s32.totalorder %s18, 0
      %p66 = por %p64, %p65
      %s68 = sadd.s32 %s67, 1
      %p71 = scmp.eq.s32.totalorder %s12, 1
      %p72 = scmp.ne.s32.totalorder %s67, %s69
      %p73 = scmp.eq.s32.totalorder %s12, 0
      %p74 = por %p72, %p73
      %p75 = scmp.ne.s32.totalorder %s67, %s69
      %p76 = scmp.eq.s32.totalorder %s17, 1
      %p77 = por %p75, %p76
      %p78 = scmp.ne.s32.totalorder %s69, %s70
      %p79 = scmp.eq.s32.totalorder %s17, 0
      %p80 = por %p78, %p79
      %p81 = scmp.ne.s32.totalorder %s69, %s70
      %p82 = scmp.eq.s32.totalorder %s18, 1
      %p83 = por %p81, %p82
      %p85 = scmp.ne.s32.totalorder %s70, %s84
      %p86 = scmp.eq.s32.totalorder %s18, 0
      %p87 = por %p85, %p86
      %s88 = ssub.s32 %s12, %s19
      %p89 = scmp.eq.s32.totalorder %s88, 0
      %s91 = sadd.s32 %s90, 1
      %s92 = scalar_select %p89, %s90, %s91
      %p95 = pneg %p89
      %p96 = scmp.eq.s32.totalorder %s12, 1
      %p97 = por %p95, %p96
      %p98 = scmp.ne.s32.totalorder %s90, %s93
      %p99 = scmp.eq.s32.totalorder %s12, 0
      %p100 = por %p98, %p99
      %p101 = scmp.ne.s32.totalorder %s90, %s93
      %p102 = scmp.eq.s32.totalorder %s17, 1
      %p103 = por %p101, %p102
      %p104 = scmp.ne.s32.totalorder %s93, %s94
      %p105 = scmp.eq.s32.totalorder %s17, 0
      %p106 = por %p104, %p105
      %p107 = scmp.ne.s32.totalorder %s93, %s94
      %p108 = scmp.eq.s32.totalorder %s18, 1
      %p109 = por %p107, %p108
      %p111 = scmp.ne.s32.totalorder %s94, %s110
      %p112 = scmp.eq.s32.totalorder %s18, 0
      %p113 = por %p111, %p112
      %p114 = scmp.le.s32.totalorder 1, %s12
      %p115 = scmp.lt.s32.totalorder %s12, 3
      %p116 = pnand %p114, %p115
      %p117 = pneg %p116
      // Predicated region
      $region9: #{tpu_custom_call.1} parent=5 // pred_check
        _
      $region10: #{tpu_custom_call.1} parent=5 // pred_check_branch
        %119 = sbr.rel (%p116) target = $region12
      $region11: #{tpu_custom_call.1} parent=5 // pred_region
        %s120 = ssub.s32 %s12, 1
        // Predicated region
        $region13: #{tpu_custom_call.1} parent=11 // pred_check
          %p121 = pneg %p59
        $region14: #{tpu_custom_call.1} parent=11 // pred_check_branch
          %123 = sbr.rel (%p121) target = $region16
        $region15: #{tpu_custom_call.1} parent=11 // pred_region
          _
        $region16: #{tpu_custom_call.1} parent=11 // pred_fallthru
          _
        // Predicated region
        $region17: #{tpu_custom_call.1} parent=11 // pred_check
          %p124 = pneg %p80
        $region18: #{tpu_custom_call.1} parent=11 // pred_check_branch
          %126 = sbr.rel (%p124) target = $region20
        $region19: #{tpu_custom_call.1} parent=11 // pred_region
          _
        $region20: #{tpu_custom_call.1} parent=11 // pred_fallthru
          _
      $region12: #{tpu_custom_call.1} parent=5 // pred_fallthru
        _
      %p127 = scmp.lt.s32.totalorder %s12, 2
      // Predicated region
      $region21: #{tpu_custom_call.1} parent=5 // pred_check
        %p128 = pneg %p127
      $region22: #{tpu_custom_call.1} parent=5 // pred_check_branch
        %130 = sbr.rel (%p128) target = $region24
      $region23: #{tpu_custom_call.1} parent=5 // pred_region
        // Predicated region
        $region25: #{tpu_custom_call.1} parent=23 // pred_check
          %p131 = pneg %p32
        $region26: #{tpu_custom_call.1} parent=23 // pred_check_branch
          %133 = sbr.rel (%p131) target = $region28
        $region27: #{tpu_custom_call.1} parent=23 // pred_region
          %p134 = scmp.lt.s32.totalorder %s12, 1
          %s135 = scalar_select %p134, %s12, 1
          %s136 = smul.addr %s135, 8
          %s137 = scalar_lea.vmem %s0, %s136
        $region28: #{tpu_custom_call.1} parent=23 // pred_fallthru
          _
      $region24: #{tpu_custom_call.1} parent=5 // pred_fallthru
        _
      %p138 = scmp.le.s32.totalorder 1, %s12
      %p139 = scmp.lt.s32.totalorder %s12, 3
      %p140 = pnand %p138, %p139
      %p141 = pneg %p140
      // Predicated region
      $region29: #{tpu_custom_call.1} parent=5 // pred_check
        _
      $region30: #{tpu_custom_call.1} parent=5 // pred_check_branch
        %143 = sbr.rel (%p140) target = $region32
      $region31: #{tpu_custom_call.1} parent=5 // pred_region
        %s144 = ssub.s32 %s12, 1
        %p145 = scmp.lt.s32.totalorder %s17, 1
        %s146 = scalar_select %p145, %s17, 1
        %s147 = smul.addr %s146, 8
        %s148 = scalar_lea.vmem %s0, %s147
        %p149 = pneg %p38
        %p150 = pneg %p35
        %p151 = pneg %p59
        %p152 = pneg %p56
        %p153 = pneg %p80
        %p154 = pneg %p77
        %p155 = pneg %p106
        %p156 = pneg %p103
        %s157 = sand.u32 %s93, 1
        %s158 = scalar_lea.sflag [#allocation3], %s157
        %s159 = sand.u32 %s93, 1
        %s160 = smul.addr %s159, 8
        %s161 = scalar_lea.vmem [#allocation2], %s160
        %p162 = scmp.lt.s32.totalorder %s17, 1
        %s163 = scalar_select %p162, %s17, 1
        %s164 = smul.addr %s163, 8
        %s165 = scalar_lea.vmem %s0, %s164
        %v166 = vld [vmem:[%s165] sm:$0xff]
        %vm167 = vcmask 261120
        %v168 = vsel %vm167, %v166, 0.0
        %169 = vadd.xlane.f32.xlu0 %v168
        %v170 = vpop.xlane.xlu0 %169
        %v171 = vmul.f32 %v170, 0.03125
        %v172 = vmul.f32 %v166, %v166
        %v173 = vsel %vm167, %v172, 0.0
        %174 = vadd.xlane.f32.xlu0 %v173
        %v175 = vpop.xlane.xlu0 %174
        %v176 = vmul.f32 %v175, 0.03125
        %v177 = vmul.f32 %v171, %v171
        %v178 = vsub.f32 %v176, %v177
        %v179 = vmax.f32 %v178, 0.0
        %v180 = vsub.f32 %v166, %v171
        %v181 = vadd.f32 %v179, 1e-06
        %v182 = vrsqrt.pop %v181
        %v183 = vmul.f32 %v180, %v182
        %v184 = vld [vmem:[%s1] sm:$0xff]
        %v185 = vld [vmem:[%s1 + $0x8] sm:$0xff]
        %v186 = vld [vmem:[%s1 + $0x10] sm:$0xff]
        %v187 = vld [vmem:[%s1 + $0x18] sm:$0xff]
        %v188 = vld [vmem:[%s2] sm:$0x1]
        %v190 = vlaneseq
        %v191 = vshrl.u32 %v190, 7
        %v192 = vsub.s32 0, %v191
        %v193 = vrot.slane %v188, %v192
        %v196 = vsel %vm167, %v183, 0
        %198 = vmatprep.subr.mxu0 0.0
        %199 = vmatpush1.msra.mxu0 0.0
        %200 = vmatprep.subr.mxu0 0.0
        %201 = vmatpush1.msra.mxu0 0.0
        %202 = vmatprep.subr.mxu0 0.0
        %203 = vmatpush1.msra.mxu0 0.0
        %204 = vmatprep.subr.mxu0 0.0
        %205 = vmatpush1.msra.mxu0 0.0
        %206 = vmatprep.subr.mxu0 0.0
        %207 = vmatpush1.msra.mxu0 0.0
        %208 = vmatprep.subr.mxu0 0.0
        %209 = vmatpush1.msra.mxu0 0.0
        %210 = vmatprep.subr.mxu0 0.0
        %211 = vmatpush1.msra.mxu0 0.0
        %212 = vmatprep.subr.mxu0 0.0
        %213 = vmatpush1.msra.mxu0 0.0
        %214 = vmatprep.subr.mxu0 0.0
        %215 = vmatpush1.msra.mxu0 0.0
        %216 = vmatprep.subr.mxu0 0.0
        %217 = vmatpush1.msra.mxu0 0.0
        %218 = vmatprep.subr.mxu0 0.0
        %219 = vmatpush1.msra.mxu0 0.0
        %220 = vmatprep.subr.mxu0 0.0
        %221 = vmatpush1.msra.mxu0 0.0
        %222 = vmatprep.subr.mxu0 0.0
        %223 = vmatpush1.msra.mxu0 %v187
        %224 = vmatprep.subr.mxu0 0.0
        %225 = vmatpush1.msra.mxu0 %v186
        %226 = vmatprep.subr.mxu0 0.0
        %227 = vmatpush1.msra.mxu0 %v185
        %228 = vmatprep.subr.mxu0 0.0
        %229 = vmatpush1.msra.mxu0 %v184
        %230 = vmatprep.subr.mxu0 0.0
        %231 = vmatpush2.msra.mxu0 0.0
        %232 = vmatprep.subr.mxu0 0.0
        %233 = vmatpush2.msra.mxu0 0.0
        %234 = vmatprep.subr.mxu0 0.0
        %235 = vmatpush2.msra.mxu0 0.0
        %236 = vmatprep.subr.mxu0 0.0
        %237 = vmatpush2.msra.mxu0 0.0
        %238 = vmatprep.subr.mxu0 0.0
        %239 = vmatpush2.msra.mxu0 0.0
        %240 = vmatprep.subr.mxu0 0.0
        %241 = vmatpush2.msra.mxu0 0.0
        %242 = vmatprep.subr.mxu0 0.0
        %243 = vmatpush2.msra.mxu0 0.0
        %244 = vmatprep.subr.mxu0 0.0
        %245 = vmatpush2.msra.mxu0 0.0
        %246 = vmatprep.subr.mxu0 0.0
        %247 = vmatpush2.msra.mxu0 0.0
        %248 = vmatprep.subr.mxu0 0.0
        %249 = vmatpush2.msra.mxu0 0.0
        %250 = vmatprep.subr.mxu0 0.0
        %251 = vmatpush2.msra.mxu0 0.0
        %252 = vmatprep.subr.mxu0 0.0
        %253 = vmatpush2.msra.mxu0 0.0
        %254 = vmatprep.subr.mxu0 0.0
        %255 = vmatpush2.msra.mxu0 0.0
        %256 = vmatprep.subr.mxu0 0.0
        %257 = vmatpush2.msra.mxu0 0.0
        %258 = vmatprep.subr.mxu0 0.0
        %259 = vmatpush2.msra.mxu0 0.0
        %260 = vmatprep.subr.mxu0 0.0
        %261 = vmatpush2.msra.mxu0 0.0
        %262 = vmatprep.mubr.f32.mxu0 0.0
        %263 = vmatmul.mubr.f32.gmra.mxu0 %v196
        %v264 = vpop.f32.mrf.mxu0
        %v265 = vadd.f32 %v193, %v264
        %v266 = vpop.f32.mrf.mxu0
        %267 = vdwg.mxu0
        %vm268 = vcmask 130048
        %269 = vst.msk [vmem:[%s161] sm:$0xff] %vm268, %v265
        %s270 = sand.u32 %s93, 1
        %s271 = scalar_lea.sflag [#allocation3], %s270
        %s272 = sand.u32 %s93, 1
        %s273 = smul.addr %s272, 8
        %s274 = scalar_lea.vmem [#allocation2], %s273
        // Predicated region
        $region33: #{tpu_custom_call.1} parent=31 // pred_check
          %p275 = pneg %p103
        $region34: #{tpu_custom_call.1} parent=31 // pred_check_branch
          %277 = sbr.rel (%p275) target = $region36
        $region35: #{tpu_custom_call.1} parent=31 // pred_region
          %s279 = ssub.s32 128, 128
          %280 = vsyncadd %s271, %s279
          %s281 = smul.addr %s17, 128
          %s282 = scalar_lea.hbm %s3, %s281
          %s284 = sshll.u32 %s274, 4
          %s285 = int_to_ptr.vmem [resolvable:$true] %s284
          %287 = dma.vmem_to_hbm [thread:$0]  %s285, 128, %s282, %s271
        $region36: #{tpu_custom_call.1} parent=31 // pred_fallthru
          _
      $region32: #{tpu_custom_call.1} parent=5 // pred_fallthru
        _
      %p288 = scmp.le.s32.totalorder 2, %s12
      // Predicated region
      $region37: #{tpu_custom_call.1} parent=5 // pred_check
        %p289 = pneg %p288
      $region38: #{tpu_custom_call.1} parent=5 // pred_check_branch
        %291 = sbr.rel (%p289) target = $region40
      $region39: #{tpu_custom_call.1} parent=5 // pred_region
        %s292 = ssub.s32 %s12, 2
        // Predicated region
        $region41: #{tpu_custom_call.1} parent=39 // pred_check
          %p293 = pneg %p109
        $region42: #{tpu_custom_call.1} parent=39 // pred_check_branch
          %295 = sbr.rel (%p293) target = $region44
        $region43: #{tpu_custom_call.1} parent=39 // pred_region
          %s296 = sand.u32 %s94, 1
          %s297 = scalar_lea.sflag [#allocation3], %s296
          %s298 = sand.u32 %s94, 1
          %s299 = smul.addr %s298, 8
          %s300 = scalar_lea.vmem [#allocation2], %s299
          %301 = dma.done %s297, 128
        $region44: #{tpu_custom_call.1} parent=39 // pred_fallthru
          _
      $region40: #{tpu_custom_call.1} parent=5 // pred_fallthru
        _
    $region6: #{tpu_custom_call.1} parent=1 // loop_footer
      %s16 = sadd.s32 1, %s12
    $region7: #{tpu_custom_call.1} parent=1 // loop_footer_branch
      %11 = sbr.rel target = $region3
    $region8: #{tpu_custom_call.1} parent=1 // loop_exit
      _
    %302 = vsyncpa [#allocation3], 1
    %s303 = scalar_lea.sflag [#allocation3], 1
    %304 = vsyncpa %s303, 1

</llo_original>
